<compile_context>
chip_gen: v7x
topology: tpu7x:2x2x1
jax: 0.10.0
libtpu: 0.0.40
codegen_flags: <defaults>
</compile_context>

<pallas_src>
import math
from functools import partial

import jax
import jax.numpy as jnp
from jax.experimental import pallas as pl
from jax.experimental.pallas import tpu as pltpu


_BLOCK_BYTES_CAP = 2 * 1024 * 1024      # per-block native bytes (safe for v5e's 16 MiB scoped VMEM)
_WEIGHT_BYTES_CAP = 512 * 1024          # cap for each block-diagonal (kron) weight matrix
_VMEM_LIMIT_BYTES = 32 * 1024 * 1024    # explicit scoped-VMEM request (valid on v5e/v6e/v7x)


def _sigmoid(v):
    return 1.0 / (1.0 + jnp.exp(-v))     # exp goes to the EUP


def _pooled_sum_max(x, hw_true):
    """Per-row lane-reduction sum and max in f32, masking padded lanes (static)."""
    xf = x.astype(jnp.float32)
    if x.shape[-1] != hw_true:            # static: only when HW was lane-padded
        lane = jax.lax.broadcasted_iota(jnp.int32, x.shape, 1)
        valid = lane < hw_true
        s = jnp.sum(jnp.where(valid, xf, 0.0), axis=-1, keepdims=True)
        m = jnp.max(jnp.where(valid, xf, -jnp.inf), axis=-1, keepdims=True)
    else:
        s = jnp.sum(xf, axis=-1, keepdims=True)
        m = jnp.max(xf, axis=-1, keepdims=True)
    return s, m


def _fused_kernel(x_ref, a_ref, b_ref, o_ref, *, hw_true):
    # x_ref: (TB*C, HWp)      native dtype -- TB whole images, rows = (image, channel)
    # a_ref: (TB*Cout, TB*C)  f32          -- kron(I_TB, fc1 weight)
    # b_ref: (TB*C, TB*Cout)  f32          -- kron(I_TB, fc2 weight)
    # o_ref: (TB*C, HWp)      native dtype
    x = x_ref[...]
    s, mx = _pooled_sum_max(x, hw_true)                       # (TB*C, 1) f32 each
    avg = s * (1.0 / hw_true)
    # Shared MLP kept in the natural column layout via block-diagonal weights.
    # fc2 is linear (no bias), so:
    #   fc2(relu(fc1(avg))) + fc2(relu(fc1(max))) = fc2(relu(fc1(avg)) + relu(fc1(max)))
    a = a_ref[...]
    h = (jnp.maximum(jnp.dot(a, avg, preferred_element_type=jnp.float32), 0.0)
         + jnp.maximum(jnp.dot(a, mx, preferred_element_type=jnp.float32), 0.0))
    z = jnp.dot(b_ref[...], h, preferred_element_type=jnp.float32)   # (TB*C, 1)
    gate = _sigmoid(z).astype(x.dtype)
    o_ref[...] = (x * gate).astype(o_ref.dtype)               # broadcast over lanes


def _pool_kernel(x_ref, sum_ref, max_ref, *, hw_true):
    s, m = _pooled_sum_max(x_ref[...], hw_true)
    sum_ref[...] = s
    max_ref[...] = m


def _apply_gate_kernel(x_ref, g_ref, o_ref):
    x = x_ref[...]
    o_ref[...] = (x * g_ref[...].astype(x.dtype)).astype(o_ref.dtype)


def _num_tensorcores():
    """Best-effort TensorCores-per-chip (1 on v5e/v6e, 2 on v7x); never raises."""
    try:
        info = pltpu.get_tpu_info()
    except Exception:
        return 1
    for name in ("num_cores", "core_count", "num_tensorcores", "tensorcore_count",
                 "num_cores_per_chip", "cores_per_chip"):
        n = getattr(info, name, None)
        if isinstance(n, int) and n >= 1:
            return n
    return 1


def _pick_row_tile(total_rows, row_unit, max_rows, bytes_per_row, num_tc, byte_cap):
    """Pick a row-tile TR for a (total_rows, lanes) array.

    TR must divide total_rows, be a multiple of row_unit, respect the sublane
    tiling rule (TR % 8 == 0 or TR == total_rows), be <= max_rows and fit the
    byte cap.  On multi-TC chips prefer a step count that is a multiple of the
    TC count (balanced 'parallel' sharding); otherwise take the largest tile.
    Returns None if nothing fits the byte cap.
    """
    hi = min(max_rows, total_rows)
    valid = [tr for tr in range(row_unit, hi + 1, row_unit)
             if total_rows % tr == 0 and (tr % 8 == 0 or tr == total_rows)]
    fitting = [tr for tr in valid if tr * bytes_per_row <= byte_cap]
    if not fitting:
        return None
    if num_tc > 1:
        balanced = [tr for tr in fitting if (total_rows // tr) % num_tc == 0]
        if balanced:
            return max(balanced)
    return max(fitting)


def _channel_attention_two_pass(x2, w1f, w2f, B, C, HW, HWp, num_tc, max_block_bytes,
                                cparams):
    """Fallback when one image does not fit the block cap: tile the (B*C) rows.

    Pass 1 pools per row, the tiny (B, C) MLP runs in plain JAX, pass 2 applies the
    per-row gate.  x is streamed twice (1.5x HBM traffic vs the fused path) but every
    block stays inside scoped VMEM.
    """
    # TODO(synk): additionally tile the HW (lane) axis with a reduction grid for
    # shapes where even an 8-row stripe exceeds the VMEM cap.
    BC = B * C
    itemsize = jnp.dtype(x2.dtype).itemsize
    tr = _pick_row_tile(BC, 1, BC, HWp * itemsize, num_tc, max_block_bytes)
    if tr is None:
        tr = min(t for t in range(1, BC + 1)
                 if BC % t == 0 and (t % 8 == 0 or t == BC))

    sums, maxs = pl.pallas_call(
        partial(_pool_kernel, hw_true=HW),
        out_shape=(jax.ShapeDtypeStruct((BC, 1), jnp.float32),
                   jax.ShapeDtypeStruct((BC, 1), jnp.float32)),
        grid=(BC // tr,),
        in_specs=[pl.BlockSpec((tr, HWp), lambda i: (i, 0))],
        out_specs=(pl.BlockSpec((tr, 1), lambda i: (i, 0)),
                   pl.BlockSpec((tr, 1), lambda i: (i, 0))),
        compiler_params=cparams,
    )(x2)

    avg = sums.reshape(B, C) * (1.0 / HW)
    mx = maxs.reshape(B, C)

    def mlp(p):                                   # tiny (B, C) matmuls in plain JAX
        return jnp.maximum(p @ w1f.T, 0.0) @ w2f.T

    gate = _sigmoid(mlp(avg) + mlp(mx)).reshape(BC, 1)

    return pl.pallas_call(
        _apply_gate_kernel,
        out_shape=jax.ShapeDtypeStruct((BC, HWp), x2.dtype),
        grid=(BC // tr,),
        in_specs=[pl.BlockSpec((tr, HWp), lambda i: (i, 0)),
                  pl.BlockSpec((tr, 1), lambda i: (i, 0))],
        out_specs=pl.BlockSpec((tr, HWp), lambda i: (i, 0)),
        compiler_params=cparams,
    )(x2, gate)


def channel_attention(x, w1, w2, *, max_block_bytes=_BLOCK_BYTES_CAP):
    """x: (B, C, H, W); w1: (Cout, C) fc1 1x1-conv weight; w2: (C, Cout) fc2 weight."""
    B, C, H, W = x.shape
    Cout = w1.shape[0]
    HW = H * W
    HWp = ((HW + 127) // 128) * 128               # lane-dense spatial width

    x2 = x.reshape(B * C, HW)
    if HWp != HW:
        # Zero-pad lanes; kernel divides the mean by the true HW and masks the
        # padded lanes with -inf for the max.
        x2 = jnp.pad(x2, ((0, 0), (0, HWp - HW)))

    w1f = w1.astype(jnp.float32)
    w2f = w2.astype(jnp.float32)

    BC = B * C
    itemsize = jnp.dtype(x.dtype).itemsize
    bytes_per_row = HWp * itemsize
    num_tc = _num_tensorcores()

    # Cap images-per-block so the kron'd block-diagonal weights stay small.
    max_tb_w = max(1, math.isqrt(max(1, _WEIGHT_BYTES_CAP // (C * Cout * 4))))
    tr = _pick_row_tile(BC, C, max_tb_w * C, bytes_per_row, num_tc, max_block_bytes)

    cparams = pltpu.CompilerParams(
        dimension_semantics=("parallel",),        # rows / images are independent
        vmem_limit_bytes=_VMEM_LIMIT_BYTES)

    if tr is None:
        out2 = _channel_attention_two_pass(
            x2, w1f, w2f, B, C, HW, HWp, num_tc, max_block_bytes, cparams)
    else:
        tb = tr // C                              # whole images per block
        a_bd = jnp.kron(jnp.eye(tb, dtype=jnp.float32), w1f)   # (tb*Cout, tr)
        b_bd = jnp.kron(jnp.eye(tb, dtype=jnp.float32), w2f)   # (tr, tb*Cout)
        out2 = pl.pallas_call(
            partial(_fused_kernel, hw_true=HW),
            out_shape=jax.ShapeDtypeStruct((BC, HWp), x.dtype),
            grid=(BC // tr,),
            in_specs=[
                pl.BlockSpec((tr, HWp), lambda i: (i, 0)),         # x rows (streamed)
                pl.BlockSpec((tb * Cout, tr), lambda i: (0, 0)),   # fc1 (resident)
                pl.BlockSpec((tr, tb * Cout), lambda i: (0, 0)),   # fc2 (resident)
            ],
            out_specs=pl.BlockSpec((tr, HWp), lambda i: (i, 0)),
            compiler_params=cparams,
        )(x2, a_bd, b_bd)

    if HWp != HW:
        out2 = out2[:, :HW]
    return out2.reshape(B, C, H, W)


def channel_attention_reference(x, w1, w2):
    """Pure-JAX mirror of the PyTorch forward."""
    avg = jnp.mean(x, axis=(2, 3), keepdims=True)   # AdaptiveAvgPool2d(1)
    mx = jnp.max(x, axis=(2, 3), keepdims=True)     # AdaptiveMaxPool2d(1)

    def mlp(p):                                     # fc2(relu(fc1(p))), 1x1 convs, no bias
        h = jnp.maximum(jnp.einsum('oc,bcij->boij', w1, p), 0.0)
        return jnp.einsum('co,boij->bcij', w2, h)

    return _sigmoid(mlp(avg) + mlp(mx)) * x


if __name__ == "__main__":
    key = jax.random.PRNGKey(0)
    k1, k2, k3, k4 = jax.random.split(key, 4)

    B, C, H, W = 2, 4, 16, 16          # in_planes = 4
    Cout = 8                           # out_planes = 8

    x = jax.random.normal(k1, (B, C, H, W), jnp.float32)
    # nn.Conv2d(in, out, 1, bias=False) weights with the trailing 1x1 dims squeezed
    w1 = jax.random.normal(k2, (Cout, C), jnp.float32) * 0.3   # fc1: (out_planes, in_planes)
    w2 = jax.random.normal(k3, (C, Cout), jnp.float32) * 0.3   # fc2: (in_planes, out_planes)

    # 1) fused single-pass path, f32 streaming dtype
    out = jax.block_until_ready(channel_attention(x, w1, w2))
    ref = channel_attention_reference(x, w1, w2)
    assert out.shape == x.shape and out.dtype == x.dtype
    err = float(jnp.max(jnp.abs(out - ref)))
    assert err < 1e-4, f"f32 fused path mismatch: {err}"

    # 2) native bf16 streaming dtype (halves HBM traffic; pooled stats / MLP still f32)
    xb = x.astype(jnp.bfloat16)
    outb = jax.block_until_ready(channel_attention(xb, w1, w2))
    refb = channel_attention_reference(xb.astype(jnp.float32), w1, w2)
    assert outb.dtype == jnp.bfloat16
    errb = float(jnp.max(jnp.abs(outb.astype(jnp.float32) - refb)))
    assert errb < 6e-2, f"bf16 path mismatch: {errb}"

    # 3) spatial size that is not a multiple of 128 lanes (padding + masked max)
    xs = jax.random.normal(k4, (B, C, 10, 10), jnp.float32)
    outs = jax.block_until_ready(channel_attention(xs, w1, w2))
    errs = float(jnp.max(jnp.abs(outs - channel_attention_reference(xs, w1, w2))))
    assert errs < 1e-4, f"lane-padded path mismatch: {errs}"

    # 4) force the two-pass intra-image-tiled fallback with a tiny block cap
    outf = jax.block_until_ready(channel_attention(x, w1, w2, max_block_bytes=1024))
    errf = float(jnp.max(jnp.abs(outf - ref)))
    assert errf < 1e-4, f"two-pass fallback mismatch: {errf}"

    print("KERNEL_OK")
</pallas_src>

<mosaic_0001>
module attributes {stable_mosaic.version = 11 : i64} {
  func.func @_fused_kernel(%arg0: i32, %arg1: memref<8x256xf32, #tpu.memory_space<vmem>>, %arg2: memref<16x8xf32, #tpu.memory_space<vmem>>, %arg3: memref<8x16xf32, #tpu.memory_space<vmem>>, %arg4: memref<8x256xf32, #tpu.memory_space<vmem>>) attributes {dimension_semantics = [#tpu.dimension_semantics<parallel>], iteration_bounds = array<i64: 1>, scalar_prefetch = 0 : i64, scratch_operands = 0 : i64, tpu.core_type = #tpu.core_type<tc>, window_params = [{transform_indices = @transform_0, window_bounds = array<i64: 8, 256>}, {pipeline_mode = #tpu.pipeline_mode<synchronous>, transform_indices = @transform_1, window_bounds = array<i64: 16, 8>}, {pipeline_mode = #tpu.pipeline_mode<synchronous>, transform_indices = @transform_2, window_bounds = array<i64: 8, 16>}, {transform_indices = @transform_3, window_bounds = array<i64: 8, 256>}]} {
    %c0 = arith.constant 0 : index
    %c0_0 = arith.constant 0 : index
    %0 = vector.load %arg1[%c0, %c0_0] : memref<8x256xf32, #tpu.memory_space<vmem>>, vector<8x256xf32>
    %cst = arith.constant dense<0.000000e+00> : vector<8xf32>
    %1 = vector.multi_reduction <add>, %0, %cst [1] : vector<8x256xf32> to vector<8xf32>
    %2 = vector.shape_cast %1 : vector<8xf32> to vector<8x1xf32>
    %cst_1 = arith.constant dense<0xFF800000> : vector<8xf32>
    %3 = vector.multi_reduction <maximumf>, %0, %cst_1 [1] : vector<8x256xf32> to vector<8xf32>
    %4 = vector.shape_cast %3 : vector<8xf32> to vector<8x1xf32>
    %cst_2 = arith.constant 3.906250e-03 : f32
    %5 = vector.broadcast %cst_2 : f32 to vector<8x1xf32>
    %6 = arith.mulf %2, %5 : vector<8x1xf32>
    %c0_3 = arith.constant 0 : index
    %c0_4 = arith.constant 0 : index
    %7 = vector.load %arg2[%c0_3, %c0_4] : memref<16x8xf32, #tpu.memory_space<vmem>>, vector<16x8xf32>
    %cst_5 = arith.constant dense<0.000000e+00> : vector<16x1xf32>
    %8 = tpu.matmul %7, %6, %cst_5 {dimension_numbers = #tpu.dot_dimension_numbers<[1], [0], [0], [1], [0, 0, 1, 1], [], []>} : vector<16x8xf32>, vector<8x1xf32>, vector<16x1xf32> -> vector<16x1xf32>
    %cst_6 = arith.constant 0.000000e+00 : f32
    %9 = vector.broadcast %cst_6 : f32 to vector<16x1xf32>
    %10 = arith.maximumf %8, %9 : vector<16x1xf32>
    %cst_7 = arith.constant dense<0.000000e+00> : vector<16x1xf32>
    %11 = tpu.matmul %7, %4, %cst_7 {dimension_numbers = #tpu.dot_dimension_numbers<[1], [0], [0], [1], [0, 0, 1, 1], [], []>} : vector<16x8xf32>, vector<8x1xf32>, vector<16x1xf32> -> vector<16x1xf32>
    %cst_8 = arith.constant 0.000000e+00 : f32
    %12 = vector.broadcast %cst_8 : f32 to vector<16x1xf32>
    %13 = arith.maximumf %11, %12 : vector<16x1xf32>
    %14 = arith.addf %10, %13 : vector<16x1xf32>
    %c0_9 = arith.constant 0 : index
    %c0_10 = arith.constant 0 : index
    %15 = vector.load %arg3[%c0_9, %c0_10] : memref<8x16xf32, #tpu.memory_space<vmem>>, vector<8x16xf32>
    %cst_11 = arith.constant dense<0.000000e+00> : vector<8x1xf32>
    %16 = tpu.matmul %15, %14, %cst_11 {dimension_numbers = #tpu.dot_dimension_numbers<[1], [0], [0], [1], [0, 0, 1, 1], [], []>} : vector<8x16xf32>, vector<16x1xf32>, vector<8x1xf32> -> vector<8x1xf32>
    %cst_12 = arith.constant 0.000000e+00 : f32
    %17 = vector.broadcast %cst_12 : f32 to vector<8x1xf32>
    %18 = arith.subf %17, %16 : vector<8x1xf32>
    %19 = math.exp %18 : vector<8x1xf32>
    %cst_13 = arith.constant 1.000000e+00 : f32
    %20 = vector.broadcast %cst_13 : f32 to vector<8x1xf32>
    %21 = arith.addf %20, %19 : vector<8x1xf32>
    %cst_14 = arith.constant 1.000000e+00 : f32
    %22 = vector.broadcast %cst_14 : f32 to vector<8x1xf32>
    %23 = arith.divf %22, %21 : vector<8x1xf32>
    %24 = vector.broadcast %23 : vector<8x1xf32> to vector<8x256xf32>
    %25 = arith.mulf %0, %24 : vector<8x256xf32>
    %c0_15 = arith.constant 0 : index
    %c0_16 = arith.constant 0 : index
    %26 = vector.load %arg4[%c0_15, %c0_16] : memref<8x256xf32, #tpu.memory_space<vmem>>, vector<8x256xf32>
    tpu.vector_store %arg4[%c0_15, %c0_16], %25 {strides = array<i32>} : memref<8x256xf32, #tpu.memory_space<vmem>>, vector<8x256xf32>,
    return
  }
  func.func @transform_0(%arg0: i32) -> (i32, i32) {
    %c0_i32 = arith.constant 0 : i32
    %c0_i32_0 = arith.constant 0 : i32
    return %arg0, %c0_i32 : i32, i32
  }
  func.func @transform_1(%arg0: i32) -> (i32, i32) {
    %c0_i32 = arith.constant 0 : i32
    %c0_i32_0 = arith.constant 0 : i32
    %c0_i32_1 = arith.constant 0 : i32
    return %c0_i32, %c0_i32_0 : i32, i32
  }
  func.func @transform_2(%arg0: i32) -> (i32, i32) {
    %c0_i32 = arith.constant 0 : i32
    %c0_i32_0 = arith.constant 0 : i32
    %c0_i32_1 = arith.constant 0 : i32
    return %c0_i32, %c0_i32_0 : i32, i32
  }
  func.func @transform_3(%arg0: i32) -> (i32, i32) {
    %c0_i32 = arith.constant 0 : i32
    %c0_i32_0 = arith.constant 0 : i32
    return %arg0, %c0_i32 : i32, i32
  }
}

</mosaic_0001>

<llo_original>
// kernel: tpu_custom_call.1
$region0: #{tpu_custom_call.1}
  #allocation0 [shape = 'u32[]', space=smem, size = 0x4, offset = 0x4, fixed_abs, tag = 'smem constant byte address 0x4 - core index']
  #allocation1 [shape = 'u32[144,128]{1,0:T(1,128)}', space=vmem, size = 0x12000, scoped, tag = 'internal scratch']
  %s0 = inlined_call_operand.vmem [shape: f32[8,256], index: 0, kind: input, shape index: {}]
  %s1 = inlined_call_operand.vmem [shape: f32[16,8], index: 1, kind: input, shape index: {}]
  %s2 = inlined_call_operand.vmem [shape: f32[8,16], index: 2, kind: input, shape index: {}]
  %s3 = inlined_call_operand.hbm [shape: f32[8,256], index: 3, kind: output, shape index: {}]
  %s4 = sld [smem:[#allocation0]]
  $region22: #{tpu_custom_call.1} parent=0
    _
  %s6 = ssub.s32 1, %s4
  %s7 = scalar_select 0, %s6, %s4
  $region1: #{tpu_custom_call.1} parent=0
    #allocation2 [shape = 'u8[8192]{0}', space=vmem, size = 0x2000, scoped, tag = 'output window, operand 0, single buffered']
    #allocation3 [shape = 's32[1]{0}', space=sflag, size = 0x4, scoped, tag = 'scoped memory for tpu_custom_call.1']
    %8 = vsyncpa [#allocation3], 0
    // Predicated region
    $region2: #{tpu_custom_call.1} parent=1 // pred_check
      _
    $region3: #{tpu_custom_call.1} parent=1 // pred_check_branch
      %10 = sbr.rel (0) target = $region5
    $region4: #{tpu_custom_call.1} parent=1 // pred_region
      _
    $region5: #{tpu_custom_call.1} parent=1 // pred_fallthru
      _
    // Predicated region
    $region6: #{tpu_custom_call.1} parent=1 // pred_check
      _
    $region7: #{tpu_custom_call.1} parent=1 // pred_check_branch
      %12 = sbr.rel (0) target = $region9
    $region8: #{tpu_custom_call.1} parent=1 // pred_region
      _
    $region9: #{tpu_custom_call.1} parent=1 // pred_fallthru
      _
    // Predicated region
    $region10: #{tpu_custom_call.1} parent=1 // pred_check
      _
    $region11: #{tpu_custom_call.1} parent=1 // pred_check_branch
      %14 = sbr.rel (0) target = $region13
    $region12: #{tpu_custom_call.1} parent=1 // pred_region
      _
    $region13: #{tpu_custom_call.1} parent=1 // pred_fallthru
      _
    %v15 = vld [vmem:[%s0] sm:$0xff]
    %v16 = vld [vmem:[%s0 + $0x8] sm:$0xff]
    %v17 = vadd.f32 %v15, %v16
    %18 = vadd.xlane.f32.xlu0 %v17
    %v19 = vpop.xlane.xlu0 %18
    %v20 = vmax.f32 %v15, %v16
    %21 = vmax.xlane.f32.xlu0 %v20
    %v22 = vpop.xlane.xlu0 %21
    %v23 = vmul.f32 %v19, 0.00390625
    %v24 = vld [vmem:[%s1] sm:$0xff]
    %v25 = vld [vmem:[%s1 + $0x8] sm:$0xff]
    %vm26 = vcmask 64512
    %v28 = vsel %vm26, %v24, 0
    %v31 = vsel %vm26, %v25, 0
    %33 = vmatprep.subr.mxu0 0.0
    %34 = vmatpush1.msra.mxu0 %v23
    %35 = vmatprep.subr.mxu0 0.0
    %36 = vmatpush1.msra.mxu0 0.0
    %37 = vmatprep.subr.mxu0 0.0
    %38 = vmatpush1.msra.mxu0 0.0
    %39 = vmatprep.subr.mxu0 0.0
    %40 = vmatpush1.msra.mxu0 0.0
    %41 = vmatprep.subr.mxu0 0.0
    %42 = vmatpush1.msra.mxu0 0.0
    %43 = vmatprep.subr.mxu0 0.0
    %44 = vmatpush1.msra.mxu0 0.0
    %45 = vmatprep.subr.mxu0 0.0
    %46 = vmatpush1.msra.mxu0 0.0
    %47 = vmatprep.subr.mxu0 0.0
    %48 = vmatpush1.msra.mxu0 0.0
    %49 = vmatprep.subr.mxu0 0.0
    %50 = vmatpush1.msra.mxu0 0.0
    %51 = vmatprep.subr.mxu0 0.0
    %52 = vmatpush1.msra.mxu0 0.0
    %53 = vmatprep.subr.mxu0 0.0
    %54 = vmatpush1.msra.mxu0 0.0
    %55 = vmatprep.subr.mxu0 0.0
    %56 = vmatpush1.msra.mxu0 0.0
    %57 = vmatprep.subr.mxu0 0.0
    %58 = vmatpush1.msra.mxu0 0.0
    %59 = vmatprep.subr.mxu0 0.0
    %60 = vmatpush1.msra.mxu0 0.0
    %61 = vmatprep.subr.mxu0 0.0
    %62 = vmatpush1.msra.mxu0 0.0
    %63 = vmatprep.subr.mxu0 0.0
    %64 = vmatpush1.msra.mxu0 0.0
    %65 = vmatprep.subr.mxu0 0.0
    %66 = vmatpush1.msra.mxu0 0.0
    %67 = vmatprep.subr.mxu0 0.0
    %68 = vmatpush1.msra.mxu0 0.0
    %69 = vmatprep.subr.mxu0 0.0
    %70 = vmatpush1.msra.mxu0 0.0
    %71 = vmatprep.subr.mxu0 0.0
    %72 = vmatpush1.msra.mxu0 0.0
    %73 = vmatprep.subr.mxu0 0.0
    %74 = vmatpush1.msra.mxu0 0.0
    %75 = vmatprep.subr.mxu0 0.0
    %76 = vmatpush1.msra.mxu0 0.0
    %77 = vmatprep.subr.mxu0 0.0
    %78 = vmatpush1.msra.mxu0 0.0
    %79 = vmatprep.subr.mxu0 0.0
    %80 = vmatpush1.msra.mxu0 0.0
    %81 = vmatprep.subr.mxu0 0.0
    %82 = vmatpush1.msra.mxu0 0.0
    %83 = vmatprep.subr.mxu0 0.0
    %84 = vmatpush1.msra.mxu0 0.0
    %85 = vmatprep.subr.mxu0 0.0
    %86 = vmatpush1.msra.mxu0 0.0
    %87 = vmatprep.subr.mxu0 0.0
    %88 = vmatpush1.msra.mxu0 0.0
    %89 = vmatprep.subr.mxu0 0.0
    %90 = vmatpush1.msra.mxu0 0.0
    %91 = vmatprep.subr.mxu0 0.0
    %92 = vmatpush1.msra.mxu0 0.0
    %93 = vmatprep.subr.mxu0 0.0
    %94 = vmatpush1.msra.mxu0 0.0
    %95 = vmatprep.subr.mxu0 0.0
    %96 = vmatpush1.msra.mxu0 0.0
    %97 = vmatprep.mubr.f32.mxu0 0.0
    %98 = vmatmul.mubr.f32.gmra.mrb[0].mxu0 %v28
    %v99 = vpop.f32.mrb[0].mxu0
    %v100 = vadd.f32 0.0, %v99
    %v101 = vpop.f32.mrb[0].mxu0
    %102 = vmatprep.mubr.f32.mxu0 0.0
    %103 = vmatmul.mubr.f32.gmra.mrb[0].mxu0 %v31
    %v104 = vpop.f32.mrb[0].mxu0
    %v105 = vadd.f32 0.0, %v104
    %v106 = vpop.f32.mrb[0].mxu0
    %107 = vdwg.mxu0
    %v108 = vmax.f32 %v100, 0.0
    %v109 = vmax.f32 %v105, 0.0
    %110 = vmatprep.subr.mxu0 0.0
    %111 = vmatpush1.msra.mxu0 %v22
    %112 = vmatprep.subr.mxu0 0.0
    %113 = vmatpush1.msra.mxu0 0.0
    %114 = vmatprep.subr.mxu0 0.0
    %115 = vmatpush1.msra.mxu0 0.0
    %116 = vmatprep.subr.mxu0 0.0
    %117 = vmatpush1.msra.mxu0 0.0
    %118 = vmatprep.subr.mxu0 0.0
    %119 = vmatpush1.msra.mxu0 0.0
    %120 = vmatprep.subr.mxu0 0.0
    %121 = vmatpush1.msra.mxu0 0.0
    %122 = vmatprep.subr.mxu0 0.0
    %123 = vmatpush1.msra.mxu0 0.0
    %124 = vmatprep.subr.mxu0 0.0
    %125 = vmatpush1.msra.mxu0 0.0
    %126 = vmatprep.subr.mxu0 0.0
    %127 = vmatpush1.msra.mxu0 0.0
    %128 = vmatprep.subr.mxu0 0.0
    %129 = vmatpush1.msra.mxu0 0.0
    %130 = vmatprep.subr.mxu0 0.0
    %131 = vmatpush1.msra.mxu0 0.0
    %132 = vmatprep.subr.mxu0 0.0
    %133 = vmatpush1.msra.mxu0 0.0
    %134 = vmatprep.subr.mxu0 0.0
    %135 = vmatpush1.msra.mxu0 0.0
    %136 = vmatprep.subr.mxu0 0.0
    %137 = vmatpush1.msra.mxu0 0.0
    %138 = vmatprep.subr.mxu0 0.0
    %139 = vmatpush1.msra.mxu0 0.0
    %140 = vmatprep.subr.mxu0 0.0
    %141 = vmatpush1.msra.mxu0 0.0
    %142 = vmatprep.subr.mxu0 0.0
    %143 = vmatpush1.msra.mxu0 0.0
    %144 = vmatprep.subr.mxu0 0.0
    %145 = vmatpush1.msra.mxu0 0.0
    %146 = vmatprep.subr.mxu0 0.0
    %147 = vmatpush1.msra.mxu0 0.0
    %148 = vmatprep.subr.mxu0 0.0
    %149 = vmatpush1.msra.mxu0 0.0
    %150 = vmatprep.subr.mxu0 0.0
    %151 = vmatpush1.msra.mxu0 0.0
    %152 = vmatprep.subr.mxu0 0.0
    %153 = vmatpush1.msra.mxu0 0.0
    %154 = vmatprep.subr.mxu0 0.0
    %155 = vmatpush1.msra.mxu0 0.0
    %156 = vmatprep.subr.mxu0 0.0
    %157 = vmatpush1.msra.mxu0 0.0
    %158 = vmatprep.subr.mxu0 0.0
    %159 = vmatpush1.msra.mxu0 0.0
    %160 = vmatprep.subr.mxu0 0.0
    %161 = vmatpush1.msra.mxu0 0.0
    %162 = vmatprep.subr.mxu0 0.0
    %163 = vmatpush1.msra.mxu0 0.0
    %164 = vmatprep.subr.mxu0 0.0
    %165 = vmatpush1.msra.mxu0 0.0
    %166 = vmatprep.subr.mxu0 0.0
    %167 = vmatpush1.msra.mxu0 0.0
    %168 = vmatprep.subr.mxu0 0.0
    %169 = vmatpush1.msra.mxu0 0.0
    %170 = vmatprep.subr.mxu0 0.0
    %171 = vmatpush1.msra.mxu0 0.0
    %172 = vmatprep.subr.mxu0 0.0
    %173 = vmatpush1.msra.mxu0 0.0
    %174 = vmatprep.mubr.f32.mxu0 0.0
    %175 = vmatmul.mubr.f32.gmra.mrb[0].mxu0 %v28
    %v176 = vpop.f32.mrb[0].mxu0
    %v177 = vadd.f32 0.0, %v176
    %v178 = vpop.f32.mrb[0].mxu0
    %179 = vmatprep.mubr.f32.mxu0 0.0
    %180 = vmatmul.mubr.f32.gmra.mrb[0].mxu0 %v31
    %v181 = vpop.f32.mrb[0].mxu0
    %v182 = vadd.f32 0.0, %v181
    %v183 = vpop.f32.mrb[0].mxu0
    %184 = vdwg.mxu0
    %v185 = vmax.f32 %v177, 0.0
    %v186 = vmax.f32 %v182, 0.0
    %v187 = vadd.f32 %v108, %v185
    %v188 = vadd.f32 %v109, %v186
    %v189 = vld [vmem:[%s2] sm:$0xff]
    %vm190 = vcmask 130048
    %v192 = vsel %vm190, %v189, 0
    %194 = vmatprep.subr.mxu0 0.0
    %195 = vmatpush1.msra.mxu0 %v187
    %196 = vmatprep.subr.mxu0 0.0
    %197 = vmatpush1.msra.mxu0 %v188
    %198 = vmatprep.subr.mxu0 0.0
    %199 = vmatpush1.msra.mxu0 0.0
    %200 = vmatprep.subr.mxu0 0.0
    %201 = vmatpush1.msra.mxu0 0.0
    %202 = vmatprep.subr.mxu0 0.0
    %203 = vmatpush1.msra.mxu0 0.0
    %204 = vmatprep.subr.mxu0 0.0
    %205 = vmatpush1.msra.mxu0 0.0
    %206 = vmatprep.subr.mxu0 0.0
    %207 = vmatpush1.msra.mxu0 0.0
    %208 = vmatprep.subr.mxu0 0.0
    %209 = vmatpush1.msra.mxu0 0.0
    %210 = vmatprep.subr.mxu0 0.0
    %211 = vmatpush1.msra.mxu0 0.0
    %212 = vmatprep.subr.mxu0 0.0
    %213 = vmatpush1.msra.mxu0 0.0
    %214 = vmatprep.subr.mxu0 0.0
    %215 = vmatpush1.msra.mxu0 0.0
    %216 = vmatprep.subr.mxu0 0.0
    %217 = vmatpush1.msra.mxu0 0.0
    %218 = vmatprep.subr.mxu0 0.0
    %219 = vmatpush1.msra.mxu0 0.0
    %220 = vmatprep.subr.mxu0 0.0
    %221 = vmatpush1.msra.mxu0 0.0
    %222 = vmatprep.subr.mxu0 0.0
    %223 = vmatpush1.msra.mxu0 0.0
    %224 = vmatprep.subr.mxu0 0.0
    %225 = vmatpush1.msra.mxu0 0.0
    %226 = vmatprep.subr.mxu0 0.0
    %227 = vmatpush1.msra.mxu0 0.0
    %228 = vmatprep.subr.mxu0 0.0
    %229 = vmatpush1.msra.mxu0 0.0
    %230 = vmatprep.subr.mxu0 0.0
    %231 = vmatpush1.msra.mxu0 0.0
    %232 = vmatprep.subr.mxu0 0.0
    %233 = vmatpush1.msra.mxu0 0.0
    %234 = vmatprep.subr.mxu0 0.0
    %235 = vmatpush1.msra.mxu0 0.0
    %236 = vmatprep.subr.mxu0 0.0
    %237 = vmatpush1.msra.mxu0 0.0
    %238 = vmatprep.subr.mxu0 0.0
    %239 = vmatpush1.msra.mxu0 0.0
    %240 = vmatprep.subr.mxu0 0.0
    %241 = vmatpush1.msra.mxu0 0.0
    %242 = vmatprep.subr.mxu0 0.0
    %243 = vmatpush1.msra.mxu0 0.0
    %244 = vmatprep.subr.mxu0 0.0
    %245 = vmatpush1.msra.mxu0 0.0
    %246 = vmatprep.subr.mxu0 0.0
    %247 = vmatpush1.msra.mxu0 0.0
    %248 = vmatprep.subr.mxu0 0.0
    %249 = vmatpush1.msra.mxu0 0.0
    %250 = vmatprep.subr.mxu0 0.0
    %251 = vmatpush1.msra.mxu0 0.0
    %252 = vmatprep.subr.mxu0 0.0
    %253 = vmatpush1.msra.mxu0 0.0
    %254 = vmatprep.subr.mxu0 0.0
    %255 = vmatpush1.msra.mxu0 0.0
    %256 = vmatprep.subr.mxu0 0.0
    %257 = vmatpush1.msra.mxu0 0.0
    %258 = vmatprep.mubr.f32.mxu0 0.0
    %259 = vmatmul.mubr.f32.gmra.mrb[0].mxu0 %v192
    %v260 = vpop.f32.mrb[0].mxu0
    %v261 = vadd.f32 0.0, %v260
    %v262 = vpop.f32.mrb[0].mxu0
    %263 = vdwg.mxu0
    %v264 = vsub.f32 0.0, %v261
    %v265 = vmul.f32 %v264, 1.442695
    %v266 = vpow.pop %v265
    %v267 = vadd.f32 %v266, 1.0
    %v268 = vrcp.pop %v267
    %v269 = vmul.f32 1.0, %v268
    %271 = vset.pattern.permute.xlu0 0
    %272 = vperm.xlu0 %271, %v269
    %v273 = vpop.permute.xlu0 %272
    %v275 = vmul.f32 %v15, %v273
    %v276 = vmul.f32 %v16, %v273
    %277 = vst [vmem:[#allocation2] sm:$0xff] %v275
    %278 = vst [vmem:[#allocation2 + $0x8] sm:$0xff] %v276
    // Predicated region
    $region14: #{tpu_custom_call.1} parent=1 // pred_check
      _
    $region15: #{tpu_custom_call.1} parent=1 // pred_check_branch
      %280 = sbr.rel (0) target = $region17
    $region16: #{tpu_custom_call.1} parent=1 // pred_region
      %s282 = ssub.s32 256, 256
      %283 = vsyncadd [#allocation3], %s282
      %s285 = sshll.u32 [#allocation2], 4
      %s286 = int_to_ptr.vmem [resolvable:$true] %s285
      %288 = dma.vmem_to_hbm [thread:$0]  %s286, 256, %s3, [#allocation3]
    $region17: #{tpu_custom_call.1} parent=1 // pred_fallthru
      _
    // Predicated region
    $region18: #{tpu_custom_call.1} parent=1 // pred_check
      _
    $region19: #{tpu_custom_call.1} parent=1 // pred_check_branch
      %290 = sbr.rel (0) target = $region21
    $region20: #{tpu_custom_call.1} parent=1 // pred_region
      %291 = dma.done [#allocation3], 256
    $region21: #{tpu_custom_call.1} parent=1 // pred_fallthru
      _
    %292 = vsyncpa [#allocation3], 1

</llo_original>
